<compile_context>
chip_gen: v7x
topology: tpu7x:2x2x1
jax: 0.10.0
libtpu: 0.0.40
codegen_flags: <defaults>
</compile_context>

<pallas_src>
import jax
import jax.numpy as jnp
from jax.experimental import pallas as pl
from jax.experimental.pallas import tpu as pltpu


LEAKY_SLOPE = 0.01  # torch.nn.LeakyReLU default negative_slope


def qnet_kernel(act_ref, obs_ref, w1a_ref, w1o_ref, b1_ref, w2_ref, b2_ref,
                out_ref):
    """One batch tile: fc1 (split) -> LeakyReLU -> fc2 (VPU/XLU reduce) -> tanh.

    act_ref: (TB, A)   obs_ref: (TB, O)
    w1a_ref: (A, M)    w1o_ref: (O, M)    b1_ref: (1, M)
    w2_ref:  (1, M)    b2_ref:  (1, 1) in SMEM
    out_ref: (TB, 1)
    """
    # fc1 as two MXU matmuls accumulating in f32 (== [action|obs] @ W1).
    h = jnp.dot(act_ref[...], w1a_ref[...], preferred_element_type=jnp.float32)
    h = h + jnp.dot(obs_ref[...], w1o_ref[...], preferred_element_type=jnp.float32)
    h = h + b1_ref[...]
    # LeakyReLU (VPU elementwise, f32).
    h = jnp.where(h > 0, h, LEAKY_SLOPE * h)
    # fc2: (M -> 1) as VPU multiply + cross-lane reduce (XLU), no second vmatmul.
    q = jnp.sum(h * w2_ref[...], axis=-1, keepdims=True) + b2_ref[0, 0]
    # chosen `activation` = tanh (EUP).
    out_ref[...] = jnp.tanh(q)


def q_network_forward(action, obs, w1, b1, w2, b2, *, tb=128):
    """action: (B, A), obs: (B, O), w1: (A+O, M), w2: (M, 1).

    Returns (B,) like q.squeeze() for B > 1.
    """
    B, A = action.shape
    _, O = obs.shape
    D_in, M = w1.shape
    assert D_in == A + O

    # Batch tile size: multiple of 128 when possible (MXU row alignment).
    if B % tb != 0:
        tb = B  # fall back to a single tile for ragged / tiny batches
    grid = (B // tb,)

    # Free (trace-time) reshapes / slices — no extra HBM traffic.
    w1a = w1[:A]                      # (A, M)
    w1o = w1[A:]                      # (O, M)
    b1_2d = b1.reshape(1, M)          # (1, M)
    w2_row = w2.reshape(1, M)         # (1, M)   lane-dense fc2 weight
    b2_2d = b2.reshape(1, 1)          # (1, 1)   -> SMEM scalar

    out = pl.pallas_call(
        qnet_kernel,
        out_shape=jax.ShapeDtypeStruct((B, 1), jnp.float32),
        grid=grid,
        in_specs=[
            pl.BlockSpec((tb, A), lambda i: (i, 0)),   # action tile
            pl.BlockSpec((tb, O), lambda i: (i, 0)),   # obs tile
            pl.BlockSpec((A, M), lambda i: (0, 0)),    # w1 (action half), resident
            pl.BlockSpec((O, M), lambda i: (0, 0)),    # w1 (obs half), resident
            pl.BlockSpec((1, M), lambda i: (0, 0)),    # b1
            pl.BlockSpec((1, M), lambda i: (0, 0)),    # w2 as a row
            pl.BlockSpec((1, 1), lambda i: (0, 0),
                         memory_space=pltpu.MemorySpace.SMEM),  # b2 scalar
        ],
        out_specs=pl.BlockSpec((tb, 1), lambda i: (i, 0)),
        compiler_params=pltpu.CompilerParams(
            dimension_semantics=("parallel",)),
    )(action, obs, w1a, w1o, b1_2d, w2_row, b2_2d)

    # q.squeeze(): (B, 1) -> (B,)
    # TODO(synk): PyTorch's q.squeeze() returns a 0-d scalar when B == 1;
    # this wrapper always returns shape (B,).
    return out.reshape(B)


def reference_forward(action, obs, w1, b1, w2, b2):
    """Pure-JAX reference for correctness checking."""
    inp = jnp.concatenate([action, obs], axis=-1)
    h = inp @ w1 + b1
    h = jnp.where(h > 0, h, LEAKY_SLOPE * h)
    q = h @ w2 + b2
    return jnp.tanh(q.squeeze())


if __name__ == "__main__":
    # Small shapes consistent with the module (obs_size=action_size=mid_size),
    # batch > one tile so the grid / parallel semantics are exercised.
    B = 256
    OBS = 128
    ACT = 128
    MID = 128
    D_IN = OBS + ACT

    key = jax.random.PRNGKey(0)
    k_a, k_o, k_w1, k_b1, k_w2, k_b2 = jax.random.split(key, 6)

    action = jax.random.normal(k_a, (B, ACT), dtype=jnp.float32)
    obs = jax.random.normal(k_o, (B, OBS), dtype=jnp.float32)

    # Deterministic parameter init (PyTorch-style uniform fan-in bounds),
    # stored pre-transposed as (in, out).
    bound1 = 1.0 / (D_IN ** 0.5)
    w1 = jax.random.uniform(k_w1, (D_IN, MID), jnp.float32, -bound1, bound1)
    b1 = jax.random.uniform(k_b1, (MID,), jnp.float32, -bound1, bound1)
    bound2 = 1.0 / (MID ** 0.5)
    w2 = jax.random.uniform(k_w2, (MID, 1), jnp.float32, -bound2, bound2)
    b2 = jax.random.uniform(k_b2, (1,), jnp.float32, -bound2, bound2)

    out = q_network_forward(action, obs, w1, b1, w2, b2)
    out = jax.block_until_ready(out)

    ref = reference_forward(action, obs, w1, b1, w2, b2)
    assert out.shape == (B,), out.shape
    assert jnp.allclose(out, ref, atol=1e-5, rtol=1e-5), (out, ref)

    print("KERNEL_OK")
</pallas_src>

<mosaic_0001>
module attributes {stable_mosaic.version = 11 : i64} {
  func.func @qnet_kernel(%arg0: i32, %arg1: memref<128x128xf32, #tpu.memory_space<vmem>>, %arg2: memref<128x128xf32, #tpu.memory_space<vmem>>, %arg3: memref<128x128xf32, #tpu.memory_space<vmem>>, %arg4: memref<128x128xf32, #tpu.memory_space<vmem>>, %arg5: memref<1x128xf32, #tpu.memory_space<vmem>>, %arg6: memref<1x128xf32, #tpu.memory_space<vmem>>, %arg7: memref<1x1xf32, #tpu.memory_space<smem>>, %arg8: memref<128x1xf32, #tpu.memory_space<vmem>>) attributes {dimension_semantics = [#tpu.dimension_semantics<parallel>], iteration_bounds = array<i64: 2>, scalar_prefetch = 0 : i64, scratch_operands = 0 : i64, tpu.core_type = #tpu.core_type<tc>, window_params = [{transform_indices = @transform_0, window_bounds = array<i64: 128, 128>}, {transform_indices = @transform_1, window_bounds = array<i64: 128, 128>}, {pipeline_mode = #tpu.pipeline_mode<synchronous>, transform_indices = @transform_2, window_bounds = array<i64: 128, 128>}, {pipeline_mode = #tpu.pipeline_mode<synchronous>, transform_indices = @transform_3, window_bounds = array<i64: 128, 128>}, {pipeline_mode = #tpu.pipeline_mode<synchronous>, transform_indices = @transform_4, window_bounds = array<i64: 1, 128>}, {pipeline_mode = #tpu.pipeline_mode<synchronous>, transform_indices = @transform_5, window_bounds = array<i64: 1, 128>}, {transform_indices = @transform_6, window_bounds = array<i64: 1, 1>}, {transform_indices = @transform_7, window_bounds = array<i64: 128, 1>}]} {
    %c0 = arith.constant 0 : index
    %c0_0 = arith.constant 0 : index
    %0 = vector.load %arg1[%c0, %c0_0] : memref<128x128xf32, #tpu.memory_space<vmem>>, vector<128x128xf32>
    %c0_1 = arith.constant 0 : index
    %c0_2 = arith.constant 0 : index
    %1 = vector.load %arg3[%c0_1, %c0_2] : memref<128x128xf32, #tpu.memory_space<vmem>>, vector<128x128xf32>
    %cst = arith.constant dense<0.000000e+00> : vector<128x128xf32>
    %2 = tpu.matmul %0, %1, %cst {dimension_numbers = #tpu.dot_dimension_numbers<[1], [0], [0], [1], [0, 0, 1, 1], [], []>} : vector<128x128xf32>, vector<128x128xf32>, vector<128x128xf32> -> vector<128x128xf32>
    %c0_3 = arith.constant 0 : index
    %c0_4 = arith.constant 0 : index
    %3 = vector.load %arg2[%c0_3, %c0_4] : memref<128x128xf32, #tpu.memory_space<vmem>>, vector<128x128xf32>
    %c0_5 = arith.constant 0 : index
    %c0_6 = arith.constant 0 : index
    %4 = vector.load %arg4[%c0_5, %c0_6] : memref<128x128xf32, #tpu.memory_space<vmem>>, vector<128x128xf32>
    %cst_7 = arith.constant dense<0.000000e+00> : vector<128x128xf32>
    %5 = tpu.matmul %3, %4, %cst_7 {dimension_numbers = #tpu.dot_dimension_numbers<[1], [0], [0], [1], [0, 0, 1, 1], [], []>} : vector<128x128xf32>, vector<128x128xf32>, vector<128x128xf32> -> vector<128x128xf32>
    %6 = arith.addf %2, %5 : vector<128x128xf32>
    %c0_8 = arith.constant 0 : index
    %c0_9 = arith.constant 0 : index
    %7 = vector.load %arg5[%c0_8, %c0_9] : memref<1x128xf32, #tpu.memory_space<vmem>>, vector<1x128xf32>
    %8 = vector.broadcast %7 : vector<1x128xf32> to vector<128x128xf32>
    %9 = arith.addf %6, %8 : vector<128x128xf32>
    %cst_10 = arith.constant 0.000000e+00 : f32
    %10 = vector.broadcast %cst_10 : f32 to vector<128x128xf32>
    %11 = arith.cmpf ogt, %9, %10 : vector<128x128xf32>
    %cst_11 = arith.constant 0.00999999977 : f32
    %12 = vector.broadcast %cst_11 : f32 to vector<128x128xf32>
    %13 = arith.mulf %12, %9 : vector<128x128xf32>
    %14 = arith.select %11, %9, %13 : vector<128x128xi1>, vector<128x128xf32>
    %c0_12 = arith.constant 0 : index
    %c0_13 = arith.constant 0 : index
    %15 = vector.load %arg6[%c0_12, %c0_13] : memref<1x128xf32, #tpu.memory_space<vmem>>, vector<1x128xf32>
    %16 = vector.broadcast %15 : vector<1x128xf32> to vector<128x128xf32>
    %17 = arith.mulf %14, %16 : vector<128x128xf32>
    %cst_14 = arith.constant dense<0.000000e+00> : vector<128xf32>
    %18 = vector.multi_reduction <add>, %17, %cst_14 [1] : vector<128x128xf32> to vector<128xf32>
    %19 = vector.shape_cast %18 : vector<128xf32> to vector<128x1xf32>
    %c0_15 = arith.constant 0 : index
    %c0_16 = arith.constant 0 : index
    %20 = memref.load %arg7[%c0_15, %c0_16] : memref<1x1xf32, #tpu.memory_space<smem>>
    %21 = vector.broadcast %20 : f32 to vector<128x1xf32>
    %22 = arith.addf %19, %21 : vector<128x1xf32>
    %23 = math.tanh %22 : vector<128x1xf32>
    %c0_17 = arith.constant 0 : index
    %c0_18 = arith.constant 0 : index
    %24 = vector.load %arg8[%c0_17, %c0_18] : memref<128x1xf32, #tpu.memory_space<vmem>>, vector<128x1xf32>
    tpu.vector_store %arg8[%c0_17, %c0_18], %23 {strides = array<i32>} : memref<128x1xf32, #tpu.memory_space<vmem>>, vector<128x1xf32>,
    return
  }
  func.func @transform_0(%arg0: i32) -> (i32, i32) {
    %c0_i32 = arith.constant 0 : i32
    %c0_i32_0 = arith.constant 0 : i32
    return %arg0, %c0_i32 : i32, i32
  }
  func.func @transform_1(%arg0: i32) -> (i32, i32) {
    %c0_i32 = arith.constant 0 : i32
    %c0_i32_0 = arith.constant 0 : i32
    return %arg0, %c0_i32 : i32, i32
  }
  func.func @transform_2(%arg0: i32) -> (i32, i32) {
    %c0_i32 = arith.constant 0 : i32
    %c0_i32_0 = arith.constant 0 : i32
    %c0_i32_1 = arith.constant 0 : i32
    return %c0_i32, %c0_i32_0 : i32, i32
  }
  func.func @transform_3(%arg0: i32) -> (i32, i32) {
    %c0_i32 = arith.constant 0 : i32
    %c0_i32_0 = arith.constant 0 : i32
    %c0_i32_1 = arith.constant 0 : i32
    return %c0_i32, %c0_i32_0 : i32, i32
  }
  func.func @transform_4(%arg0: i32) -> (i32, i32) {
    %c0_i32 = arith.constant 0 : i32
    %c0_i32_0 = arith.constant 0 : i32
    %c0_i32_1 = arith.constant 0 : i32
    return %c0_i32, %c0_i32_0 : i32, i32
  }
  func.func @transform_5(%arg0: i32) -> (i32, i32) {
    %c0_i32 = arith.constant 0 : i32
    %c0_i32_0 = arith.constant 0 : i32
    %c0_i32_1 = arith.constant 0 : i32
    return %c0_i32, %c0_i32_0 : i32, i32
  }
  func.func @transform_6(%arg0: i32) -> (i32, i32) {
    %c0_i32 = arith.constant 0 : i32
    %c0_i32_0 = arith.constant 0 : i32
    %c0_i32_1 = arith.constant 0 : i32
    return %c0_i32, %c0_i32_0 : i32, i32
  }
  func.func @transform_7(%arg0: i32) -> (i32, i32) {
    %c0_i32 = arith.constant 0 : i32
    %c0_i32_0 = arith.constant 0 : i32
    return %arg0, %c0_i32 : i32, i32
  }
}

</mosaic_0001>

<llo_original>
// kernel: tpu_custom_call.1
$region0: #{tpu_custom_call.1}
  #allocation0 [shape = 'u32[]', space=smem, size = 0x4, offset = 0x4, fixed_abs, tag = 'smem constant byte address 0x4 - core index']
  #allocation1 [shape = 'u32[144,128]{1,0:T(1,128)}', space=vmem, size = 0x12000, scoped, tag = 'internal scratch']
  #allocation2 [shape = 'f32[1,1]{1,0:T(1,128)S(6)}', space=smem, size = 0x200, scoped, tag = 'scoped memory for tpu_custom_call.1']
  %s0 = inlined_call_operand.hbm [shape: f32[256,128], index: 0, kind: input, shape index: {}]
  %s1 = inlined_call_operand.hbm [shape: f32[256,128], index: 1, kind: input, shape index: {}]
  %s2 = inlined_call_operand.hbm [shape: f32[128,128], index: 2, kind: input, shape index: {}]
  %s3 = inlined_call_operand.hbm [shape: f32[128,128], index: 3, kind: input, shape index: {}]
  %s4 = inlined_call_operand.vmem [shape: f32[1,128], index: 4, kind: input, shape index: {}]
  %s5 = inlined_call_operand.vmem [shape: f32[1,128], index: 5, kind: input, shape index: {}]
  %s6 = inlined_call_operand.<no memory space> [shape: f32[1,1], index: 6, kind: input, shape index: {}]
  %s7 = inlined_call_operand.vmem [shape: f32[256,1], index: 7, kind: output, shape index: {}]
  %s8 = sld [smem:[#allocation0]]
  $region77: #{tpu_custom_call.1} parent=0
    _
  %s10 = ssub.s32 1, %s8
  %s11 = scalar_select 0, %s10, %s8
  %12 = sst [smem:[#allocation2]] %s6
  $region1: #{tpu_custom_call.1} parent=0
    #allocation3 [shape = 'u8[131072]{0}', space=vmem, size = 0x20000, scoped, tag = 'input window, operand 0']
    #allocation4 [shape = 's32[2]{0}', space=sflag, size = 0x8, scoped, tag = 'scoped memory for tpu_custom_call.1']
    #allocation5 [shape = 'u8[131072]{0}', space=vmem, size = 0x20000, scoped, tag = 'input window, operand 1']
    #allocation6 [shape = 's32[2]{0}', space=sflag, size = 0x8, scoped, tag = 'scoped memory for tpu_custom_call.1']
    #allocation7 [shape = 'u8[65536]{0}', space=vmem, size = 0x10000, scoped, tag = 'input window, operand 2, single buffered']
    #allocation8 [shape = 'u8[65536]{0}', space=vmem, size = 0x10000, scoped, tag = 'input window, operand 3, single buffered']
    #allocation9 [shape = 's32[1]{0}', space=sflag, size = 0x4, scoped, tag = 'scoped memory for tpu_custom_call.1']
    %13 = vsyncpa [#allocation4], 0
    %s14 = scalar_lea.sflag [#allocation4], 1
    %15 = vsyncpa %s14, 0
    %16 = vsyncpa [#allocation6], 0
    %s17 = scalar_lea.sflag [#allocation6], 1
    %18 = vsyncpa %s17, 0
    %19 = vsyncpa [#allocation9], 0
    loop: start=0, step=1, limit=4
    $region2: #{tpu_custom_call.1} parent=1 // loop_pre_header
      _
    $region3: #{tpu_custom_call.1} parent=1 // loop_header
      %s21 = sphi 0, %s25
      %p22 = scmp.ge.s32.totalorder %s21, 4
      %s31 = sphi 0, %s33
      %s34 = sphi 0, %s31
      %s35 = sphi 0, %s34
      %s51 = sphi 0, %s35
      %s57 = sphi 0, %s59
      %s60 = sphi 0, %s57
      %s61 = sphi 0, %s60
      %s77 = sphi 0, %s61
      %s81 = sphi 0, %s81
      %s83 = sphi 0, %s81
      %s84 = sphi 0, %s83
      %s98 = sphi 0, %s84
      %s102 = sphi 0, %s102
      %s104 = sphi 0, %s102
      %s105 = sphi 0, %s104
      %s119 = sphi 0, %s105
      %s123 = sphi 0, %s123
      %s125 = sphi 0, %s123
      %s126 = sphi 0, %s125
      %s140 = sphi 0, %s126
      %s144 = sphi 0, %s144
      %s146 = sphi 0, %s144
      %s147 = sphi 0, %s146
      %s161 = sphi 0, %s147
      %s165 = sphi 0, %s165
      %s167 = sphi 0, %s165
      %s168 = sphi 0, %s167
      %s182 = sphi 0, %s168
      %s188 = sphi 0, %s190
      %s191 = sphi 0, %s188
      %s192 = sphi 0, %s191
      %s208 = sphi 0, %s192
    $region4: #{tpu_custom_call.1} parent=1 // loop_header_branch
      %24 = sbr.rel (%p22) target = $region8
    $region5: #{tpu_custom_call.1} parent=1 // loop_body
      %s26 = ssub.s32 %s21, 1
      %s27 = ssub.s32 %s21, 2
      %s28 = sadd.s32 %s21, 1
      %s29 = ssub.s32 %s21, %s28
      %p30 = scmp.eq.s32.totalorder %s29, 0
      %s32 = sadd.s32 %s31, 1
      %s33 = scalar_select %p30, %s31, %s32
      %p36 = pneg %p30
      %p37 = scmp.eq.s32.totalorder %s21, 1
      %p38 = por %p36, %p37
      %p39 = scmp.ne.s32.totalorder %s31, %s34
      %p40 = scmp.eq.s32.totalorder %s21, 0
      %p41 = por %p39, %p40
      %p42 = scmp.ne.s32.totalorder %s31, %s34
      %p43 = scmp.eq.s32.totalorder %s26, 1
      %p44 = por %p42, %p43
      %p45 = scmp.ne.s32.totalorder %s34, %s35
      %p46 = scmp.eq.s32.totalorder %s26, 0
      %p47 = por %p45, %p46
      %p48 = scmp.ne.s32.totalorder %s34, %s35
      %p49 = scmp.eq.s32.totalorder %s27, 1
      %p50 = por %p48, %p49
      %p52 = scmp.ne.s32.totalorder %s35, %s51
      %p53 = scmp.eq.s32.totalorder %s27, 0
      %p54 = por %p52, %p53
      %s55 = ssub.s32 %s21, %s28
      %p56 = scmp.eq.s32.totalorder %s55, 0
      %s58 = sadd.s32 %s57, 1
      %s59 = scalar_select %p56, %s57, %s58
      %p62 = pneg %p56
      %p63 = scmp.eq.s32.totalorder %s21, 1
      %p64 = por %p62, %p63
      %p65 = scmp.ne.s32.totalorder %s57, %s60
      %p66 = scmp.eq.s32.totalorder %s21, 0
      %p67 = por %p65, %p66
      %p68 = scmp.ne.s32.totalorder %s57, %s60
      %p69 = scmp.eq.s32.totalorder %s26, 1
      %p70 = por %p68, %p69
      %p71 = scmp.ne.s32.totalorder %s60, %s61
      %p72 = scmp.eq.s32.totalorder %s26, 0
      %p73 = por %p71, %p72
      %p74 = scmp.ne.s32.totalorder %s60, %s61
      %p75 = scmp.eq.s32.totalorder %s27, 1
      %p76 = por %p74, %p75
      %p78 = scmp.ne.s32.totalorder %s61, %s77
      %p79 = scmp.eq.s32.totalorder %s27, 0
      %p80 = por %p78, %p79
      %s82 = sadd.s32 %s81, 1
      %p85 = scmp.eq.s32.totalorder %s21, 1
      %p86 = scmp.ne.s32.totalorder %s81, %s83
      %p87 = scmp.eq.s32.totalorder %s21, 0
      %p88 = por %p86, %p87
      %p89 = scmp.ne.s32.totalorder %s81, %s83
      %p90 = scmp.eq.s32.totalorder %s26, 1
      %p91 = por %p89, %p90
      %p92 = scmp.ne.s32.totalorder %s83, %s84
      %p93 = scmp.eq.s32.totalorder %s26, 0
      %p94 = por %p92, %p93
      %p95 = scmp.ne.s32.totalorder %s83, %s84
      %p96 = scmp.eq.s32.totalorder %s27, 1
      %p97 = por %p95, %p96
      %p99 = scmp.ne.s32.totalorder %s84, %s98
      %p100 = scmp.eq.s32.totalorder %s27, 0
      %p101 = por %p99, %p100
      %s103 = sadd.s32 %s102, 1
      %p106 = scmp.eq.s32.totalorder %s21, 1
      %p107 = scmp.ne.s32.totalorder %s102, %s104
      %p108 = scmp.eq.s32.totalorder %s21, 0
      %p109 = por %p107, %p108
      %p110 = scmp.ne.s32.totalorder %s102, %s104
      %p111 = scmp.eq.s32.totalorder %s26, 1
      %p112 = por %p110, %p111
      %p113 = scmp.ne.s32.totalorder %s104, %s105
      %p114 = scmp.eq.s32.totalorder %s26, 0
      %p115 = por %p113, %p114
      %p116 = scmp.ne.s32.totalorder %s104, %s105
      %p117 = scmp.eq.s32.totalorder %s27, 1
      %p118 = por %p116, %p117
      %p120 = scmp.ne.s32.totalorder %s105, %s119
      %p121 = scmp.eq.s32.totalorder %s27, 0
      %p122 = por %p120, %p121
      %s124 = sadd.s32 %s123, 1
      %p127 = scmp.eq.s32.totalorder %s21, 1
      %p128 = scmp.ne.s32.totalorder %s123, %s125
      %p129 = scmp.eq.s32.totalorder %s21, 0
      %p130 = por %p128, %p129
      %p131 = scmp.ne.s32.totalorder %s123, %s125
      %p132 = scmp.eq.s32.totalorder %s26, 1
      %p133 = por %p131, %p132
      %p134 = scmp.ne.s32.totalorder %s125, %s126
      %p135 = scmp.eq.s32.totalorder %s26, 0
      %p136 = por %p134, %p135
      %p137 = scmp.ne.s32.totalorder %s125, %s126
      %p138 = scmp.eq.s32.totalorder %s27, 1
      %p139 = por %p137, %p138
      %p141 = scmp.ne.s32.totalorder %s126, %s140
      %p142 = scmp.eq.s32.totalorder %s27, 0
      %p143 = por %p141, %p142
      %s145 = sadd.s32 %s144, 1
      %p148 = scmp.eq.s32.totalorder %s21, 1
      %p149 = scmp.ne.s32.totalorder %s144, %s146
      %p150 = scmp.eq.s32.totalorder %s21, 0
      %p151 = por %p149, %p150
      %p152 = scmp.ne.s32.totalorder %s144, %s146
      %p153 = scmp.eq.s32.totalorder %s26, 1
      %p154 = por %p152, %p153
      %p155 = scmp.ne.s32.totalorder %s146, %s147
      %p156 = scmp.eq.s32.totalorder %s26, 0
      %p157 = por %p155, %p156
      %p158 = scmp.ne.s32.totalorder %s146, %s147
      %p159 = scmp.eq.s32.totalorder %s27, 1
      %p160 = por %p158, %p159
      %p162 = scmp.ne.s32.totalorder %s147, %s161
      %p163 = scmp.eq.s32.totalorder %s27, 0
      %p164 = por %p162, %p163
      %s166 = sadd.s32 %s165, 1
      %p169 = scmp.eq.s32.totalorder %s21, 1
      %p170 = scmp.ne.s32.totalorder %s165, %s167
      %p171 = scmp.eq.s32.totalorder %s21, 0
      %p172 = por %p170, %p171
      %p173 = scmp.ne.s32.totalorder %s165, %s167
      %p174 = scmp.eq.s32.totalorder %s26, 1
      %p175 = por %p173, %p174
      %p176 = scmp.ne.s32.totalorder %s167, %s168
      %p177 = scmp.eq.s32.totalorder %s26, 0
      %p178 = por %p176, %p177
      %p179 = scmp.ne.s32.totalorder %s167, %s168
      %p180 = scmp.eq.s32.totalorder %s27, 1
      %p181 = por %p179, %p180
      %p183 = scmp.ne.s32.totalorder %s168, %s182
      %p184 = scmp.eq.s32.totalorder %s27, 0
      %p185 = por %p183, %p184
      %s186 = ssub.s32 %s21, %s28
      %p187 = scmp.eq.s32.totalorder %s186, 0
      %s189 = sadd.s32 %s188, 1
      %s190 = scalar_select %p187, %s188, %s189
      %p193 = pneg %p187
      %p194 = scmp.eq.s32.totalorder %s21, 1
      %p195 = por %p193, %p194
      %p196 = scmp.ne.s32.totalorder %s188, %s191
      %p197 = scmp.eq.s32.totalorder %s21, 0
      %p198 = por %p196, %p197
      %p199 = scmp.ne.s32.totalorder %s188, %s191
      %p200 = scmp.eq.s32.totalorder %s26, 1
      %p201 = por %p199, %p200
      %p202 = scmp.ne.s32.totalorder %s191, %s192
      %p203 = scmp.eq.s32.totalorder %s26, 0
      %p204 = por %p202, %p203
      %p205 = scmp.ne.s32.totalorder %s191, %s192
      %p206 = scmp.eq.s32.totalorder %s27, 1
      %p207 = por %p205, %p206
      %p209 = scmp.ne.s32.totalorder %s192, %s208
      %p210 = scmp.eq.s32.totalorder %s27, 0
      %p211 = por %p209, %p210
      %p212 = scmp.le.s32.totalorder 1, %s21
      %p213 = scmp.lt.s32.totalorder %s21, 3
      %p214 = pnand %p212, %p213
      %p215 = pneg %p214
      // Predicated region
      $region9: #{tpu_custom_call.1} parent=5 // pred_check
        _
      $region10: #{tpu_custom_call.1} parent=5 // pred_check_branch
        %217 = sbr.rel (%p214) target = $region12
      $region11: #{tpu_custom_call.1} parent=5 // pred_region
        %s218 = ssub.s32 %s21, 1
        // Predicated region
        $region13: #{tpu_custom_call.1} parent=11 // pred_check
          %p219 = pneg %p94
        $region14: #{tpu_custom_call.1} parent=11 // pred_check_branch
          %221 = sbr.rel (%p219) target = $region16
        $region15: #{tpu_custom_call.1} parent=11 // pred_region
          %s223 = ssub.s32 2048, 2048
          %224 = vsyncadd [#allocation6], %s223
          %s225 = sshll.u32 [#allocation7], 4
          %s226 = int_to_ptr.vmem [resolvable:$true] %s225
          %231 = dma.hbm_to_vmem [thread:$0]  %s2, 2048, %s226, [#allocation6], 128, 128, 8
        $region16: #{tpu_custom_call.1} parent=11 // pred_fallthru
          _
        // Predicated region
        $region17: #{tpu_custom_call.1} parent=11 // pred_check
          %p232 = pneg %p115
        $region18: #{tpu_custom_call.1} parent=11 // pred_check_branch
          %234 = sbr.rel (%p232) target = $region20
        $region19: #{tpu_custom_call.1} parent=11 // pred_region
          %s236 = ssub.s32 2048, 2048
          %237 = vsyncadd [#allocation9], %s236
          %s238 = sshll.u32 [#allocation8], 4
          %s239 = int_to_ptr.vmem [resolvable:$true] %s238
          %244 = dma.hbm_to_vmem [thread:$0]  %s3, 2048, %s239, [#allocation9], 128, 128, 8
        $region20: #{tpu_custom_call.1} parent=11 // pred_fallthru
          _
        // Predicated region
        $region21: #{tpu_custom_call.1} parent=11 // pred_check
          %p245 = pneg %p136
        $region22: #{tpu_custom_call.1} parent=11 // pred_check_branch
          %247 = sbr.rel (%p245) target = $region24
        $region23: #{tpu_custom_call.1} parent=11 // pred_region
          _
        $region24: #{tpu_custom_call.1} parent=11 // pred_fallthru
          _
        // Predicated region
        $region25: #{tpu_custom_call.1} parent=11 // pred_check
          %p248 = pneg %p157
        $region26: #{tpu_custom_call.1} parent=11 // pred_check_branch
          %250 = sbr.rel (%p248) target = $region28
        $region27: #{tpu_custom_call.1} parent=11 // pred_region
          _
        $region28: #{tpu_custom_call.1} parent=11 // pred_fallthru
          _
        // Predicated region
        $region29: #{tpu_custom_call.1} parent=11 // pred_check
          %p251 = pneg %p178
        $region30: #{tpu_custom_call.1} parent=11 // pred_check_branch
          %253 = sbr.rel (%p251) target = $region32
        $region31: #{tpu_custom_call.1} parent=11 // pred_region
          _
        $region32: #{tpu_custom_call.1} parent=11 // pred_fallthru
          _
      $region12: #{tpu_custom_call.1} parent=5 // pred_fallthru
        _
      %p254 = scmp.lt.s32.totalorder %s21, 2
      // Predicated region
      $region33: #{tpu_custom_call.1} parent=5 // pred_check
        %p255 = pneg %p254
      $region34: #{tpu_custom_call.1} parent=5 // pred_check_branch
        %257 = sbr.rel (%p255) target = $region36
      $region35: #{tpu_custom_call.1} parent=5 // pred_region
        // Predicated region
        $region37: #{tpu_custom_call.1} parent=35 // pred_check
          %p258 = pneg %p41
        $region38: #{tpu_custom_call.1} parent=35 // pred_check_branch
          %260 = sbr.rel (%p258) target = $region40
        $region39: #{tpu_custom_call.1} parent=35 // pred_region
          %s261 = sand.u32 %s31, 1
          %s262 = scalar_lea.sflag [#allocation4], %s261
          %s263 = sand.u32 %s31, 1
          %s264 = smul.addr %s263, 128
          %s265 = scalar_lea.vmem [#allocation3], %s264
          %s266 = smul.u32 16, %s21
          %s268 = ssub.s32 2048, 2048
          %269 = vsyncadd %s262, %s268
          %s270 = smul.addr %s266, 128
          %s271 = scalar_lea.hbm %s0, %s270
          %s272 = sshll.u32 %s265, 4
          %s273 = int_to_ptr.vmem [resolvable:$true] %s272
          %278 = dma.hbm_to_vmem [thread:$0]  %s271, 2048, %s273, %s262, 128, 128, 8
        $region40: #{tpu_custom_call.1} parent=35 // pred_fallthru
          _
        // Predicated region
        $region41: #{tpu_custom_call.1} parent=35 // pred_check
          %p279 = pneg %p67
        $region42: #{tpu_custom_call.1} parent=35 // pred_check_branch
          %281 = sbr.rel (%p279) target = $region44
        $region43: #{tpu_custom_call.1} parent=35 // pred_region
          %s282 = sand.u32 %s21, 1
          %s283 = scalar_lea.sflag [#allocation6], %s282
          %s284 = sand.u32 %s57, 1
          %s285 = smul.addr %s284, 128
          %s286 = scalar_lea.vmem [#allocation5], %s285
          %s287 = smul.u32 16, %s21
          %s289 = ssub.s32 2048, 2048
          %290 = vsyncadd %s283, %s289
          %s291 = smul.addr %s287, 128
          %s292 = scalar_lea.hbm %s1, %s291
          %s293 = sshll.u32 %s286, 4
          %s294 = int_to_ptr.vmem [resolvable:$true] %s293
          %299 = dma.hbm_to_vmem [thread:$0]  %s292, 2048, %s294, %s283, 128, 128, 8
        $region44: #{tpu_custom_call.1} parent=35 // pred_fallthru
          _
      $region36: #{tpu_custom_call.1} parent=5 // pred_fallthru
        _
      %p300 = scmp.le.s32.totalorder 1, %s21
      %p301 = scmp.lt.s32.totalorder %s21, 3
      %p302 = pnand %p300, %p301
      %p303 = pneg %p302
      // Predicated region
      $region45: #{tpu_custom_call.1} parent=5 // pred_check
        _
      $region46: #{tpu_custom_call.1} parent=5 // pred_check_branch
        %305 = sbr.rel (%p302) target = $region48
      $region47: #{tpu_custom_call.1} parent=5 // pred_region
        %s306 = ssub.s32 %s21, 1
        %s307 = sand.u32 %s34, 1
        %s308 = scalar_lea.sflag [#allocation4], %s307
        %s309 = sand.u32 %s34, 1
        %s310 = smul.addr %s309, 128
        %s311 = scalar_lea.vmem [#allocation3], %s310
        // Predicated region
        $region49: #{tpu_custom_call.1} parent=47 // pred_check
          %p312 = pneg %p47
        $region50: #{tpu_custom_call.1} parent=47 // pred_check_branch
          %314 = sbr.rel (%p312) target = $region52
        $region51: #{tpu_custom_call.1} parent=47 // pred_region
          %315 = dma.done %s308, 2048
        $region52: #{tpu_custom_call.1} parent=47 // pred_fallthru
          _
        %s316 = sand.u32 %s26, 1
        %s317 = scalar_lea.sflag [#allocation6], %s316
        %s318 = sand.u32 %s60, 1
        %s319 = smul.addr %s318, 128
        %s320 = scalar_lea.vmem [#allocation5], %s319
        // Predicated region
        $region53: #{tpu_custom_call.1} parent=47 // pred_check
          %p321 = pneg %p73
        $region54: #{tpu_custom_call.1} parent=47 // pred_check_branch
          %323 = sbr.rel (%p321) target = $region56
        $region55: #{tpu_custom_call.1} parent=47 // pred_region
          %324 = dma.done %s317, 2048
        $region56: #{tpu_custom_call.1} parent=47 // pred_fallthru
          _
        // Predicated region
        $region57: #{tpu_custom_call.1} parent=47 // pred_check
          %p325 = pneg %p94
        $region58: #{tpu_custom_call.1} parent=47 // pred_check_branch
          %327 = sbr.rel (%p325) target = $region60
        $region59: #{tpu_custom_call.1} parent=47 // pred_region
          %328 = dma.done [#allocation6], 2048
        $region60: #{tpu_custom_call.1} parent=47 // pred_fallthru
          _
        // Predicated region
        $region61: #{tpu_custom_call.1} parent=47 // pred_check
          %p329 = pneg %p115
        $region62: #{tpu_custom_call.1} parent=47 // pred_check_branch
          %331 = sbr.rel (%p329) target = $region64
        $region63: #{tpu_custom_call.1} parent=47 // pred_region
          %332 = dma.done [#allocation9], 2048
        $region64: #{tpu_custom_call.1} parent=47 // pred_fallthru
          _
        %s333 = sand.u32 %s34, 1
        %s334 = scalar_lea.sflag [#allocation4], %s333
        %s335 = sand.u32 %s34, 1
        %s336 = smul.addr %s335, 128
        %s337 = scalar_lea.vmem [#allocation3], %s336
        %p338 = pneg %p47
        %p339 = pneg %p44
        %s340 = sand.u32 %s26, 1
        %s341 = scalar_lea.sflag [#allocation6], %s340
        %s342 = sand.u32 %s60, 1
        %s343 = smul.addr %s342, 128
        %s344 = scalar_lea.vmem [#allocation5], %s343
        %p345 = pneg %p73
        %p346 = pneg %p70
        %p347 = pneg %p94
        %p348 = pneg %p91
        %p349 = pneg %p115
        %p350 = pneg %p112
        %p351 = pneg %p136
        %p352 = pneg %p133
        %p353 = pneg %p157
        %p354 = pneg %p154
        %p355 = pneg %p178
        %p356 = pneg %p175
        %p357 = pneg %p204
        %p358 = pneg %p201
        %s359 = smul.u32 16, %s26
        %p360 = scmp.lt.s32.totalorder %s359, 31
        %s361 = scalar_select %p360, %s359, 31
        %s362 = smul.addr %s361, 8
        %s363 = scalar_lea.vmem %s7, %s362
        %s364 = smul.u32 16, %s26
        %s365 = smul.u32 16, %s26
        %s366 = smul.u32 16, %s26
        %p367 = scmp.lt.s32.totalorder %s366, 31
        %s368 = scalar_select %p367, %s366, 31
        %s369 = smul.addr %s368, 8
        %s370 = scalar_lea.vmem %s7, %s369
        %s371 = smul.u32 16, %s26
        %v372 = vld [vmem:[%s311] sm:$0xff]
        %v373 = vld [vmem:[%s311 + $0x8] sm:$0xff]
        %v374 = vld [vmem:[%s311 + $0x10] sm:$0xff]
        %v375 = vld [vmem:[%s311 + $0x18] sm:$0xff]
        %v376 = vld [vmem:[%s311 + $0x20] sm:$0xff]
        %v377 = vld [vmem:[%s311 + $0x28] sm:$0xff]
        %v378 = vld [vmem:[%s311 + $0x30] sm:$0xff]
        %v379 = vld [vmem:[%s311 + $0x38] sm:$0xff]
        %v380 = vld [vmem:[%s311 + $0x40] sm:$0xff]
        %v381 = vld [vmem:[%s311 + $0x48] sm:$0xff]
        %v382 = vld [vmem:[%s311 + $0x50] sm:$0xff]
        %v383 = vld [vmem:[%s311 + $0x58] sm:$0xff]
        %v384 = vld [vmem:[%s311 + $0x60] sm:$0xff]
        %v385 = vld [vmem:[%s311 + $0x68] sm:$0xff]
        %v386 = vld [vmem:[%s311 + $0x70] sm:$0xff]
        %v387 = vld [vmem:[%s311 + $0x78] sm:$0xff]
        %v388 = vld [vmem:[#allocation7] sm:$0xff]
        %v389 = vld [vmem:[#allocation7 + $0x8] sm:$0xff]
        %v390 = vld [vmem:[#allocation7 + $0x10] sm:$0xff]
        %v391 = vld [vmem:[#allocation7 + $0x18] sm:$0xff]
        %v392 = vld [vmem:[#allocation7 + $0x20] sm:$0xff]
        %v393 = vld [vmem:[#allocation7 + $0x28] sm:$0xff]
        %v394 = vld [vmem:[#allocation7 + $0x30] sm:$0xff]
        %v395 = vld [vmem:[#allocation7 + $0x38] sm:$0xff]
        %v396 = vld [vmem:[#allocation7 + $0x40] sm:$0xff]
        %v397 = vld [vmem:[#allocation7 + $0x48] sm:$0xff]
        %v398 = vld [vmem:[#allocation7 + $0x50] sm:$0xff]
        %v399 = vld [vmem:[#allocation7 + $0x58] sm:$0xff]
        %v400 = vld [vmem:[#allocation7 + $0x60] sm:$0xff]
        %v401 = vld [vmem:[#allocation7 + $0x68] sm:$0xff]
        %v402 = vld [vmem:[#allocation7 + $0x70] sm:$0xff]
        %v403 = vld [vmem:[#allocation7 + $0x78] sm:$0xff]
        %v404 = vld [vmem:[%s320] sm:$0xff]
        %v405 = vld [vmem:[%s320 + $0x8] sm:$0xff]
        %v406 = vld [vmem:[%s320 + $0x10] sm:$0xff]
        %v407 = vld [vmem:[%s320 + $0x18] sm:$0xff]
        %v408 = vld [vmem:[%s320 + $0x20] sm:$0xff]
        %v409 = vld [vmem:[%s320 + $0x28] sm:$0xff]
        %v410 = vld [vmem:[%s320 + $0x30] sm:$0xff]
        %v411 = vld [vmem:[%s320 + $0x38] sm:$0xff]
        %v412 = vld [vmem:[%s320 + $0x40] sm:$0xff]
        %v413 = vld [vmem:[%s320 + $0x48] sm:$0xff]
        %v414 = vld [vmem:[%s320 + $0x50] sm:$0xff]
        %v415 = vld [vmem:[%s320 + $0x58] sm:$0xff]
        %v416 = vld [vmem:[%s320 + $0x60] sm:$0xff]
        %v417 = vld [vmem:[%s320 + $0x68] sm:$0xff]
        %v418 = vld [vmem:[%s320 + $0x70] sm:$0xff]
        %v419 = vld [vmem:[%s320 + $0x78] sm:$0xff]
        %v420 = vld [vmem:[#allocation8] sm:$0xff]
        %v421 = vld [vmem:[#allocation8 + $0x8] sm:$0xff]
        %v422 = vld [vmem:[#allocation8 + $0x10] sm:$0xff]
        %v423 = vld [vmem:[#allocation8 + $0x18] sm:$0xff]
        %v424 = vld [vmem:[#allocation8 + $0x20] sm:$0xff]
        %v425 = vld [vmem:[#allocation8 + $0x28] sm:$0xff]
        %v426 = vld [vmem:[#allocation8 + $0x30] sm:$0xff]
        %v427 = vld [vmem:[#allocation8 + $0x38] sm:$0xff]
        %v428 = vld [vmem:[#allocation8 + $0x40] sm:$0xff]
        %v429 = vld [vmem:[#allocation8 + $0x48] sm:$0xff]
        %v430 = vld [vmem:[#allocation8 + $0x50] sm:$0xff]
        %v431 = vld [vmem:[#allocation8 + $0x58] sm:$0xff]
        %v432 = vld [vmem:[#allocation8 + $0x60] sm:$0xff]
        %v433 = vld [vmem:[#allocation8 + $0x68] sm:$0xff]
        %v434 = vld [vmem:[#allocation8 + $0x70] sm:$0xff]
        %v435 = vld [vmem:[#allocation8 + $0x78] sm:$0xff]
        %436 = vmatprep.subr.mxu0 0.0
        %437 = vmatpush1.msra.mxu0 %v420
        %438 = vmatprep.subr.mxu0 0.0
        %439 = vmatpush1.msra.mxu0 %v421
        %440 = vmatprep.subr.mxu0 0.0
        %441 = vmatpush1.msra.mxu0 %v422
        %442 = vmatprep.subr.mxu0 0.0
        %443 = vmatpush1.msra.mxu0 %v423
        %444 = vmatprep.subr.mxu0 0.0
        %445 = vmatpush1.msra.mxu0 %v424
        %446 = vmatprep.subr.mxu0 0.0
        %447 = vmatpush1.msra.mxu0 %v425
        %448 = vmatprep.subr.mxu0 0.0
        %449 = vmatpush1.msra.mxu0 %v426
        %450 = vmatprep.subr.mxu0 0.0
        %451 = vmatpush1.msra.mxu0 %v427
        %452 = vmatprep.subr.mxu0 0.0
        %453 = vmatpush1.msra.mxu0 %v428
        %454 = vmatprep.subr.mxu0 0.0
        %455 = vmatpush1.msra.mxu0 %v429
        %456 = vmatprep.subr.mxu0 0.0
        %457 = vmatpush1.msra.mxu0 %v430
        %458 = vmatprep.subr.mxu0 0.0
        %459 = vmatpush1.msra.mxu0 %v431
        %460 = vmatprep.subr.mxu0 0.0
        %461 = vmatpush1.msra.mxu0 %v432
        %462 = vmatprep.subr.mxu0 0.0
        %463 = vmatpush1.msra.mxu0 %v433
        %464 = vmatprep.subr.mxu0 0.0
        %465 = vmatpush1.msra.mxu0 %v434
        %466 = vmatprep.subr.mxu0 0.0
        %467 = vmatpush1.msra.mxu0 %v435
        %468 = vmatprep.subr.mxu0 0.0
        %469 = vmatpush1.msra.mxu0 0.0
        %470 = vmatprep.subr.mxu0 0.0
        %471 = vmatpush1.msra.mxu0 0.0
        %472 = vmatprep.subr.mxu0 0.0
        %473 = vmatpush1.msra.mxu0 0.0
        %474 = vmatprep.subr.mxu0 0.0
        %475 = vmatpush1.msra.mxu0 0.0
        %476 = vmatprep.subr.mxu0 0.0
        %477 = vmatpush1.msra.mxu0 0.0
        %478 = vmatprep.subr.mxu0 0.0
        %479 = vmatpush1.msra.mxu0 0.0
        %480 = vmatprep.subr.mxu0 0.0
        %481 = vmatpush1.msra.mxu0 0.0
        %482 = vmatprep.subr.mxu0 0.0
        %483 = vmatpush1.msra.mxu0 0.0
        %484 = vmatprep.subr.mxu0 0.0
        %485 = vmatpush1.msra.mxu0 0.0
        %486 = vmatprep.subr.mxu0 0.0
        %487 = vmatpush1.msra.mxu0 0.0
        %488 = vmatprep.subr.mxu0 0.0
        %489 = vmatpush1.msra.mxu0 0.0
        %490 = vmatprep.subr.mxu0 0.0
        %491 = vmatpush1.msra.mxu0 0.0
        %492 = vmatprep.subr.mxu0 0.0
        %493 = vmatpush1.msra.mxu0 0.0
        %494 = vmatprep.subr.mxu0 0.0
        %495 = vmatpush1.msra.mxu0 0.0
        %496 = vmatprep.subr.mxu0 0.0
        %497 = vmatpush1.msra.mxu0 0.0
        %498 = vmatprep.subr.mxu0 0.0
        %499 = vmatpush1.msra.mxu0 0.0
        %500 = vmatprep.mubr.f32.mxu0 0.0
        %501 = vmatmul.mubr.f32.gmra.mrb[0].mxu0 %v404
        %v502 = vpop.f32.mrb[0].mxu0
        %v503 = vadd.f32 0.0, %v502
        %v504 = vpop.f32.mrb[0].mxu0
        %505 = vmatprep.mubr.f32.mxu0 0.0
        %506 = vmatmul.mubr.f32.gmra.mrb[0].mxu0 %v405
        %v507 = vpop.f32.mrb[0].mxu0
        %v508 = vadd.f32 0.0, %v507
        %v509 = vpop.f32.mrb[0].mxu0
        %510 = vmatprep.mubr.f32.mxu0 0.0
        %511 = vmatmul.mubr.f32.gmra.mrb[0].mxu0 %v406
        %v512 = vpop.f32.mrb[0].mxu0
        %v513 = vadd.f32 0.0, %v512
        %v514 = vpop.f32.mrb[0].mxu0
        %515 = vmatprep.mubr.f32.mxu0 0.0
        %516 = vmatmul.mubr.f32.gmra.mrb[0].mxu0 %v407
        %v517 = vpop.f32.mrb[0].mxu0
        %v518 = vadd.f32 0.0, %v517
        %v519 = vpop.f32.mrb[0].mxu0
        %520 = vmatprep.mubr.f32.mxu0 0.0
        %521 = vmatmul.mubr.f32.gmra.mrb[0].mxu0 %v408
        %v522 = vpop.f32.mrb[0].mxu0
        %v523 = vadd.f32 0.0, %v522
        %v524 = vpop.f32.mrb[0].mxu0
        %525 = vmatprep.mubr.f32.mxu0 0.0
        %526 = vmatmul.mubr.f32.gmra.mrb[0].mxu0 %v409
        %v527 = vpop.f32.mrb[0].mxu0
        %v528 = vadd.f32 0.0, %v527
        %v529 = vpop.f32.mrb[0].mxu0
        %530 = vmatprep.mubr.f32.mxu0 0.0
        %531 = vmatmul.mubr.f32.gmra.mrb[0].mxu0 %v410
        %v532 = vpop.f32.mrb[0].mxu0
        %v533 = vadd.f32 0.0, %v532
        %v534 = vpop.f32.mrb[0].mxu0
        %535 = vmatprep.mubr.f32.mxu0 0.0
        %536 = vmatmul.mubr.f32.gmra.mrb[0].mxu0 %v411
        %v537 = vpop.f32.mrb[0].mxu0
        %v538 = vadd.f32 0.0, %v537
        %v539 = vpop.f32.mrb[0].mxu0
        %540 = vmatprep.mubr.f32.mxu0 0.0
        %541 = vmatmul.mubr.f32.gmra.mrb[0].mxu0 %v412
        %v542 = vpop.f32.mrb[0].mxu0
        %v543 = vadd.f32 0.0, %v542
        %v544 = vpop.f32.mrb[0].mxu0
        %545 = vmatprep.mubr.f32.mxu0 0.0
        %546 = vmatmul.mubr.f32.gmra.mrb[0].mxu0 %v413
        %v547 = vpop.f32.mrb[0].mxu0
        %v548 = vadd.f32 0.0, %v547
        %v549 = vpop.f32.mrb[0].mxu0
        %550 = vmatprep.mubr.f32.mxu0 0.0
        %551 = vmatmul.mubr.f32.gmra.mrb[0].mxu0 %v414
        %v552 = vpop.f32.mrb[0].mxu0
        %v553 = vadd.f32 0.0, %v552
        %v554 = vpop.f32.mrb[0].mxu0
        %555 = vmatprep.mubr.f32.mxu0 0.0
        %556 = vmatmul.mubr.f32.gmra.mrb[0].mxu0 %v415
        %v557 = vpop.f32.mrb[0].mxu0
        %v558 = vadd.f32 0.0, %v557
        %v559 = vpop.f32.mrb[0].mxu0
        %560 = vmatprep.mubr.f32.mxu0 0.0
        %561 = vmatmul.mubr.f32.gmra.mrb[0].mxu0 %v416
        %v562 = vpop.f32.mrb[0].mxu0
        %v563 = vadd.f32 0.0, %v562
        %v564 = vpop.f32.mrb[0].mxu0
        %565 = vmatprep.mubr.f32.mxu0 0.0
        %566 = vmatmul.mubr.f32.gmra.mrb[0].mxu0 %v417
        %v567 = vpop.f32.mrb[0].mxu0
        %v568 = vadd.f32 0.0, %v567
        %v569 = vpop.f32.mrb[0].mxu0
        %570 = vmatprep.mubr.f32.mxu0 0.0
        %571 = vmatmul.mubr.f32.gmra.mrb[0].mxu0 %v418
        %v572 = vpop.f32.mrb[0].mxu0
        %v573 = vadd.f32 0.0, %v572
        %v574 = vpop.f32.mrb[0].mxu0
        %575 = vmatprep.mubr.f32.mxu0 0.0
        %576 = vmatmul.mubr.f32.gmra.mrb[0].mxu0 %v419
        %v577 = vpop.f32.mrb[0].mxu0
        %v578 = vadd.f32 0.0, %v577
        %v579 = vpop.f32.mrb[0].mxu0
        %580 = vdwg.mxu0
        %581 = vmatprep.subr.mxu0 0.0
        %582 = vmatpush1.msra.mxu0 %v388
        %583 = vmatprep.subr.mxu0 0.0
        %584 = vmatpush1.msra.mxu0 %v389
        %585 = vmatprep.subr.mxu0 0.0
        %586 = vmatpush1.msra.mxu0 %v390
        %587 = vmatprep.subr.mxu0 0.0
        %588 = vmatpush1.msra.mxu0 %v391
        %589 = vmatprep.subr.mxu0 0.0
        %590 = vmatpush1.msra.mxu0 %v392
        %591 = vmatprep.subr.mxu0 0.0
        %592 = vmatpush1.msra.mxu0 %v393
        %593 = vmatprep.subr.mxu0 0.0
        %594 = vmatpush1.msra.mxu0 %v394
        %595 = vmatprep.subr.mxu0 0.0
        %596 = vmatpush1.msra.mxu0 %v395
        %597 = vmatprep.subr.mxu0 0.0
        %598 = vmatpush1.msra.mxu0 %v396
        %599 = vmatprep.subr.mxu0 0.0
        %600 = vmatpush1.msra.mxu0 %v397
        %601 = vmatprep.subr.mxu0 0.0
        %602 = vmatpush1.msra.mxu0 %v398
        %603 = vmatprep.subr.mxu0 0.0
        %604 = vmatpush1.msra.mxu0 %v399
        %605 = vmatprep.subr.mxu0 0.0
        %606 = vmatpush1.msra.mxu0 %v400
        %607 = vmatprep.subr.mxu0 0.0
        %608 = vmatpush1.msra.mxu0 %v401
        %609 = vmatprep.subr.mxu0 0.0
        %610 = vmatpush1.msra.mxu0 %v402
        %611 = vmatprep.subr.mxu0 0.0
        %612 = vmatpush1.msra.mxu0 %v403
        %613 = vmatprep.subr.mxu0 0.0
        %614 = vmatpush1.msra.mxu0 0.0
        %615 = vmatprep.subr.mxu0 0.0
        %616 = vmatpush1.msra.mxu0 0.0
        %617 = vmatprep.subr.mxu0 0.0
        %618 = vmatpush1.msra.mxu0 0.0
        %619 = vmatprep.subr.mxu0 0.0
        %620 = vmatpush1.msra.mxu0 0.0
        %621 = vmatprep.subr.mxu0 0.0
        %622 = vmatpush1.msra.mxu0 0.0
        %623 = vmatprep.subr.mxu0 0.0
        %624 = vmatpush1.msra.mxu0 0.0
        %625 = vmatprep.subr.mxu0 0.0
        %626 = vmatpush1.msra.mxu0 0.0
        %627 = vmatprep.subr.mxu0 0.0
        %628 = vmatpush1.msra.mxu0 0.0
        %629 = vmatprep.subr.mxu0 0.0
        %630 = vmatpush1.msra.mxu0 0.0
        %631 = vmatprep.subr.mxu0 0.0
        %632 = vmatpush1.msra.mxu0 0.0
        %633 = vmatprep.subr.mxu0 0.0
        %634 = vmatpush1.msra.mxu0 0.0
        %635 = vmatprep.subr.mxu0 0.0
        %636 = vmatpush1.msra.mxu0 0.0
        %637 = vmatprep.subr.mxu0 0.0
        %638 = vmatpush1.msra.mxu0 0.0
        %639 = vmatprep.subr.mxu0 0.0
        %640 = vmatpush1.msra.mxu0 0.0
        %641 = vmatprep.subr.mxu0 0.0
        %642 = vmatpush1.msra.mxu0 0.0
        %643 = vmatprep.subr.mxu0 0.0
        %644 = vmatpush1.msra.mxu0 0.0
        %645 = vmatprep.mubr.f32.mxu0 0.0
        %646 = vmatmul.mubr.f32.gmra.mrb[0].mxu0 %v372
        %v647 = vpop.f32.mrb[0].mxu0
        %v648 = vadd.f32 %v503, %v647
        %v649 = vpop.f32.mrb[0].mxu0
        %650 = vmatprep.mubr.f32.mxu0 0.0
        %651 = vmatmul.mubr.f32.gmra.mrb[0].mxu0 %v373
        %v652 = vpop.f32.mrb[0].mxu0
        %v653 = vadd.f32 %v508, %v652
        %v654 = vpop.f32.mrb[0].mxu0
        %655 = vmatprep.mubr.f32.mxu0 0.0
        %656 = vmatmul.mubr.f32.gmra.mrb[0].mxu0 %v374
        %v657 = vpop.f32.mrb[0].mxu0
        %v658 = vadd.f32 %v513, %v657
        %v659 = vpop.f32.mrb[0].mxu0
        %660 = vmatprep.mubr.f32.mxu0 0.0
        %661 = vmatmul.mubr.f32.gmra.mrb[0].mxu0 %v375
        %v662 = vpop.f32.mrb[0].mxu0
        %v663 = vadd.f32 %v518, %v662
        %v664 = vpop.f32.mrb[0].mxu0
        %665 = vmatprep.mubr.f32.mxu0 0.0
        %666 = vmatmul.mubr.f32.gmra.mrb[0].mxu0 %v376
        %v667 = vpop.f32.mrb[0].mxu0
        %v668 = vadd.f32 %v523, %v667
        %v669 = vpop.f32.mrb[0].mxu0
        %670 = vmatprep.mubr.f32.mxu0 0.0
        %671 = vmatmul.mubr.f32.gmra.mrb[0].mxu0 %v377
        %v672 = vpop.f32.mrb[0].mxu0
        %v673 = vadd.f32 %v528, %v672
        %v674 = vpop.f32.mrb[0].mxu0
        %675 = vmatprep.mubr.f32.mxu0 0.0
        %676 = vmatmul.mubr.f32.gmra.mrb[0].mxu0 %v378
        %v677 = vpop.f32.mrb[0].mxu0
        %v678 = vadd.f32 %v533, %v677
        %v679 = vpop.f32.mrb[0].mxu0
        %680 = vmatprep.mubr.f32.mxu0 0.0
        %681 = vmatmul.mubr.f32.gmra.mrb[0].mxu0 %v379
        %v682 = vpop.f32.mrb[0].mxu0
        %v683 = vadd.f32 %v538, %v682
        %v684 = vpop.f32.mrb[0].mxu0
        %685 = vmatprep.mubr.f32.mxu0 0.0
        %686 = vmatmul.mubr.f32.gmra.mrb[0].mxu0 %v380
        %v687 = vpop.f32.mrb[0].mxu0
        %v688 = vadd.f32 %v543, %v687
        %v689 = vpop.f32.mrb[0].mxu0
        %690 = vmatprep.mubr.f32.mxu0 0.0
        %691 = vmatmul.mubr.f32.gmra.mrb[0].mxu0 %v381
        %v692 = vpop.f32.mrb[0].mxu0
        %v693 = vadd.f32 %v548, %v692
        %v694 = vpop.f32.mrb[0].mxu0
        %695 = vmatprep.mubr.f32.mxu0 0.0
        %696 = vmatmul.mubr.f32.gmra.mrb[0].mxu0 %v382
        %v697 = vpop.f32.mrb[0].mxu0
        %v698 = vadd.f32 %v553, %v697
        %v699 = vpop.f32.mrb[0].mxu0
        %700 = vmatprep.mubr.f32.mxu0 0.0
        %701 = vmatmul.mubr.f32.gmra.mrb[0].mxu0 %v383
        %v702 = vpop.f32.mrb[0].mxu0
        %v703 = vadd.f32 %v558, %v702
        %v704 = vpop.f32.mrb[0].mxu0
        %705 = vmatprep.mubr.f32.mxu0 0.0
        %706 = vmatmul.mubr.f32.gmra.mrb[0].mxu0 %v384
        %v707 = vpop.f32.mrb[0].mxu0
        %v708 = vadd.f32 %v563, %v707
        %v709 = vpop.f32.mrb[0].mxu0
        %710 = vmatprep.mubr.f32.mxu0 0.0
        %711 = vmatmul.mubr.f32.gmra.mrb[0].mxu0 %v385
        %v712 = vpop.f32.mrb[0].mxu0
        %v713 = vadd.f32 %v568, %v712
        %v714 = vpop.f32.mrb[0].mxu0
        %715 = vmatprep.mubr.f32.mxu0 0.0
        %716 = vmatmul.mubr.f32.gmra.mrb[0].mxu0 %v386
        %v717 = vpop.f32.mrb[0].mxu0
        %v718 = vadd.f32 %v573, %v717
        %v719 = vpop.f32.mrb[0].mxu0
        %720 = vmatprep.mubr.f32.mxu0 0.0
        %721 = vmatmul.mubr.f32.gmra.mrb[0].mxu0 %v387
        %v722 = vpop.f32.mrb[0].mxu0
        %v723 = vadd.f32 %v578, %v722
        %v724 = vpop.f32.mrb[0].mxu0
        %725 = vdwg.mxu0
        %v726 = vld [vmem:[%s4] sm:$0x1]
        %v728 = vlaneseq
        %v729 = vshrl.u32 %v728, 7
        %v730 = vsub.s32 0, %v729
        %v731 = vrot.slane %v726, %v730
        %v733 = vadd.f32 %v648, %v731
        %v734 = vadd.f32 %v653, %v731
        %v735 = vadd.f32 %v658, %v731
        %v736 = vadd.f32 %v663, %v731
        %v737 = vadd.f32 %v668, %v731
        %v738 = vadd.f32 %v673, %v731
        %v739 = vadd.f32 %v678, %v731
        %v740 = vadd.f32 %v683, %v731
        %v741 = vadd.f32 %v688, %v731
        %v742 = vadd.f32 %v693, %v731
        %v743 = vadd.f32 %v698, %v731
        %v744 = vadd.f32 %v703, %v731
        %v745 = vadd.f32 %v708, %v731
        %v746 = vadd.f32 %v713, %v731
        %v747 = vadd.f32 %v718, %v731
        %v748 = vadd.f32 %v723, %v731
        %vm749 = vcmp.gt.f32.partialorder %v733, 0.0
        %vm750 = vcmp.gt.f32.partialorder %v734, 0.0
        %vm751 = vcmp.gt.f32.partialorder %v735, 0.0
        %vm752 = vcmp.gt.f32.partialorder %v736, 0.0
        %vm753 = vcmp.gt.f32.partialorder %v737, 0.0
        %vm754 = vcmp.gt.f32.partialorder %v738, 0.0
        %vm755 = vcmp.gt.f32.partialorder %v739, 0.0
        %vm756 = vcmp.gt.f32.partialorder %v740, 0.0
        %vm757 = vcmp.gt.f32.partialorder %v741, 0.0
        %vm758 = vcmp.gt.f32.partialorder %v742, 0.0
        %vm759 = vcmp.gt.f32.partialorder %v743, 0.0
        %vm760 = vcmp.gt.f32.partialorder %v744, 0.0
        %vm761 = vcmp.gt.f32.partialorder %v745, 0.0
        %vm762 = vcmp.gt.f32.partialorder %v746, 0.0
        %vm763 = vcmp.gt.f32.partialorder %v747, 0.0
        %vm764 = vcmp.gt.f32.partialorder %v748, 0.0
        %v765 = vmul.f32 %v733, 0.01
        %v766 = vmul.f32 %v734, 0.01
        %v767 = vmul.f32 %v735, 0.01
        %v768 = vmul.f32 %v736, 0.01
        %v769 = vmul.f32 %v737, 0.01
        %v770 = vmul.f32 %v738, 0.01
        %v771 = vmul.f32 %v739, 0.01
        %v772 = vmul.f32 %v740, 0.01
        %v773 = vmul.f32 %v741, 0.01
        %v774 = vmul.f32 %v742, 0.01
        %v775 = vmul.f32 %v743, 0.01
        %v776 = vmul.f32 %v744, 0.01
        %v777 = vmul.f32 %v745, 0.01
        %v778 = vmul.f32 %v746, 0.01
        %v779 = vmul.f32 %v747, 0.01
        %v780 = vmul.f32 %v748, 0.01
        %v781 = vsel %vm749, %v733, %v765
        %v782 = vsel %vm750, %v734, %v766
        %v783 = vsel %vm751, %v735, %v767
        %v784 = vsel %vm752, %v736, %v768
        %v785 = vsel %vm753, %v737, %v769
        %v786 = vsel %vm754, %v738, %v770
        %v787 = vsel %vm755, %v739, %v771
        %v788 = vsel %vm756, %v740, %v772
        %v789 = vsel %vm757, %v741, %v773
        %v790 = vsel %vm758, %v742, %v774
        %v791 = vsel %vm759, %v743, %v775
        %v792 = vsel %vm760, %v744, %v776
        %v793 = vsel %vm761, %v745, %v777
        %v794 = vsel %vm762, %v746, %v778
        %v795 = vsel %vm763, %v747, %v779
        %v796 = vsel %vm764, %v748, %v780
        %v797 = vld [vmem:[%s5] sm:$0x1]
        %v799 = vlaneseq
        %v800 = vshrl.u32 %v799, 7
        %v801 = vsub.s32 0, %v800
        %v802 = vrot.slane %v797, %v801
        %v804 = vmul.f32 %v781, %v802
        %v805 = vmul.f32 %v782, %v802
        %v806 = vmul.f32 %v783, %v802
        %v807 = vmul.f32 %v784, %v802
        %v808 = vmul.f32 %v785, %v802
        %v809 = vmul.f32 %v786, %v802
        %v810 = vmul.f32 %v787, %v802
        %v811 = vmul.f32 %v788, %v802
        %v812 = vmul.f32 %v789, %v802
        %v813 = vmul.f32 %v790, %v802
        %v814 = vmul.f32 %v791, %v802
        %v815 = vmul.f32 %v792, %v802
        %v816 = vmul.f32 %v793, %v802
        %v817 = vmul.f32 %v794, %v802
        %v818 = vmul.f32 %v795, %v802
        %v819 = vmul.f32 %v796, %v802
        %820 = vadd.xlane.f32.xlu0 %v804
        %v821 = vpop.xlane.xlu0 %820
        %822 = vadd.xlane.f32.xlu0 %v805
        %v823 = vpop.xlane.xlu0 %822
        %824 = vadd.xlane.f32.xlu0 %v806
        %v825 = vpop.xlane.xlu0 %824
        %826 = vadd.xlane.f32.xlu0 %v807
        %v827 = vpop.xlane.xlu0 %826
        %828 = vadd.xlane.f32.xlu0 %v808
        %v829 = vpop.xlane.xlu0 %828
        %830 = vadd.xlane.f32.xlu0 %v809
        %v831 = vpop.xlane.xlu0 %830
        %832 = vadd.xlane.f32.xlu0 %v810
        %v833 = vpop.xlane.xlu0 %832
        %834 = vadd.xlane.f32.xlu0 %v811
        %v835 = vpop.xlane.xlu0 %834
        %836 = vadd.xlane.f32.xlu0 %v812
        %v837 = vpop.xlane.xlu0 %836
        %838 = vadd.xlane.f32.xlu0 %v813
        %v839 = vpop.xlane.xlu0 %838
        %840 = vadd.xlane.f32.xlu0 %v814
        %v841 = vpop.xlane.xlu0 %840
        %842 = vadd.xlane.f32.xlu0 %v815
        %v843 = vpop.xlane.xlu0 %842
        %844 = vadd.xlane.f32.xlu0 %v816
        %v845 = vpop.xlane.xlu0 %844
        %846 = vadd.xlane.f32.xlu0 %v817
        %v847 = vpop.xlane.xlu0 %846
        %848 = vadd.xlane.f32.xlu0 %v818
        %v849 = vpop.xlane.xlu0 %848
        %850 = vadd.xlane.f32.xlu0 %v819
        %v851 = vpop.xlane.xlu0 %850
        %s852 = sld [smem:[#allocation2]]
        %v853 = vstv %s852
        %v854 = vadd.f32 %v821, %v853
        %v855 = vadd.f32 %v823, %v853
        %v856 = vadd.f32 %v825, %v853
        %v857 = vadd.f32 %v827, %v853
        %v858 = vadd.f32 %v829, %v853
        %v859 = vadd.f32 %v831, %v853
        %v860 = vadd.f32 %v833, %v853
        %v861 = vadd.f32 %v835, %v853
        %v862 = vadd.f32 %v837, %v853
        %v863 = vadd.f32 %v839, %v853
        %v864 = vadd.f32 %v841, %v853
        %v865 = vadd.f32 %v843, %v853
        %v866 = vadd.f32 %v845, %v853
        %v867 = vadd.f32 %v847, %v853
        %v868 = vadd.f32 %v849, %v853
        %v869 = vadd.f32 %v851, %v853
        %v870 = vtanh.pop %v854
        %v871 = vtanh.pop %v855
        %v872 = vtanh.pop %v856
        %v873 = vtanh.pop %v857
        %v874 = vtanh.pop %v858
        %v875 = vtanh.pop %v859
        %v876 = vtanh.pop %v860
        %v877 = vtanh.pop %v861
        %v878 = vtanh.pop %v862
        %v879 = vtanh.pop %v863
        %v880 = vtanh.pop %v864
        %v881 = vtanh.pop %v865
        %v882 = vtanh.pop %v866
        %v883 = vtanh.pop %v867
        %v884 = vtanh.pop %v868
        %v885 = vtanh.pop %v869
        %vm886 = vcmask 7168
        %887 = vst.msk [vmem:[%s370] sm:$0xff] %vm886, %v870
        %888 = vst.msk [vmem:[%s370 + $0x8] sm:$0xff] %vm886, %v871
        %889 = vst.msk [vmem:[%s370 + $0x10] sm:$0xff] %vm886, %v872
        %890 = vst.msk [vmem:[%s370 + $0x18] sm:$0xff] %vm886, %v873
        %891 = vst.msk [vmem:[%s370 + $0x20] sm:$0xff] %vm886, %v874
        %892 = vst.msk [vmem:[%s370 + $0x28] sm:$0xff] %vm886, %v875
        %893 = vst.msk [vmem:[%s370 + $0x30] sm:$0xff] %vm886, %v876
        %894 = vst.msk [vmem:[%s370 + $0x38] sm:$0xff] %vm886, %v877
        %895 = vst.msk [vmem:[%s370 + $0x40] sm:$0xff] %vm886, %v878
        %896 = vst.msk [vmem:[%s370 + $0x48] sm:$0xff] %vm886, %v879
        %897 = vst.msk [vmem:[%s370 + $0x50] sm:$0xff] %vm886, %v880
        %898 = vst.msk [vmem:[%s370 + $0x58] sm:$0xff] %vm886, %v881
        %899 = vst.msk [vmem:[%s370 + $0x60] sm:$0xff] %vm886, %v882
        %900 = vst.msk [vmem:[%s370 + $0x68] sm:$0xff] %vm886, %v883
        %901 = vst.msk [vmem:[%s370 + $0x70] sm:$0xff] %vm886, %v884
        %902 = vst.msk [vmem:[%s370 + $0x78] sm:$0xff] %vm886, %v885
        %s903 = smul.u32 16, %s26
        %p904 = scmp.lt.s32.totalorder %s903, 31
        %s905 = scalar_select %p904, %s903, 31
        %s906 = smul.addr %s905, 8
        %s907 = scalar_lea.vmem %s7, %s906
        // Predicated region
        $region65: #{tpu_custom_call.1} parent=47 // pred_check
          %p908 = pneg %p201
        $region66: #{tpu_custom_call.1} parent=47 // pred_check_branch
          %910 = sbr.rel (%p908) target = $region68
        $region67: #{tpu_custom_call.1} parent=47 // pred_region
          %s911 = smul.u32 16, %s26
        $region68: #{tpu_custom_call.1} parent=47 // pred_fallthru
          _
      $region48: #{tpu_custom_call.1} parent=5 // pred_fallthru
        _
      %p912 = scmp.le.s32.totalorder 2, %s21
      // Predicated region
      $region69: #{tpu_custom_call.1} parent=5 // pred_check
        %p913 = pneg %p912
      $region70: #{tpu_custom_call.1} parent=5 // pred_check_branch
        %915 = sbr.rel (%p913) target = $region72
      $region71: #{tpu_custom_call.1} parent=5 // pred_region
        %s916 = ssub.s32 %s21, 2
        // Predicated region
        $region73: #{tpu_custom_call.1} parent=71 // pred_check
          %p917 = pneg %p207
        $region74: #{tpu_custom_call.1} parent=71 // pred_check_branch
          %919 = sbr.rel (%p917) target = $region76
        $region75: #{tpu_custom_call.1} parent=71 // pred_region
          %s920 = smul.u32 16, %s27
          %p921 = scmp.lt.s32.totalorder %s920, 31
          %s922 = scalar_select %p921, %s920, 31
          %s923 = smul.addr %s922, 8
          %s924 = scalar_lea.vmem %s7, %s923
        $region76: #{tpu_custom_call.1} parent=71 // pred_fallthru
          _
      $region72: #{tpu_custom_call.1} parent=5 // pred_fallthru
        _
    $region6: #{tpu_custom_call.1} parent=1 // loop_footer
      %s25 = sadd.s32 1, %s21
    $region7: #{tpu_custom_call.1} parent=1 // loop_footer_branch
      %20 = sbr.rel target = $region3
    $region8: #{tpu_custom_call.1} parent=1 // loop_exit
      _
    %925 = vsyncpa [#allocation4], 1
    %s926 = scalar_lea.sflag [#allocation4], 1
    %927 = vsyncpa %s926, 1
    %928 = vsyncpa [#allocation6], 1
    %s929 = scalar_lea.sflag [#allocation6], 1
    %930 = vsyncpa %s929, 1
    %931 = vsyncpa [#allocation9], 1

</llo_original>
